<compile_context>
chip_gen: v5e
topology: v5e:2x2
jax: 0.10.0
libtpu: 0.0.40
codegen_flags: <defaults>
</compile_context>

<pallas_src>
import functools

import jax
import jax.numpy as jnp
from jax.experimental import pallas as pl
from jax.experimental.pallas import tpu as pltpu

ACTION_BOUND_EPSILON = 1e-06
LOG_SIG_MAX = 2.0
LOG_SIG_MIN = -20.0


def _round_up(x, m):
    return ((x + m - 1) // m) * m


def _choose_batch_tile(b8, cap=2048):
    """Largest multiple of 8 that divides b8 and is <= cap.

    For large batches the cap is further limited to b8 // 2 so the grid has at
    least two steps -> both v7x TensorCores get work on the "parallel" axis.
    """
    if b8 >= 1024:
        cap = min(cap, b8 // 2)
    cap = max(8, min(cap, b8))
    best = 8
    t = 8
    while t <= cap:
        if b8 % t == 0:
            best = t
        t += 8
    return best


def _policy_kernel(action_dim, out_width,
                   obs_ref, w1_ref, b1_ref, w2_ref, b2_ref,
                   wh_ref, bh_ref, noise_ref, out_ref):
    A = action_dim

    def mm(x, w_ref):
        # Cast activations to the weight dtype (bf16 for production sizes,
        # f32 at toy sizes); accumulate in f32 on the MXU.
        return jnp.dot(x.astype(w_ref.dtype), w_ref[...],
                       preferred_element_type=jnp.float32)

    # ---- hidden MLP (Linear + ReLU), elementwise tail always f32 ----
    h = obs_ref[...]
    h = jnp.maximum(mm(h, w1_ref) + b1_ref[...], 0.0)
    h = jnp.maximum(mm(h, w2_ref) + b2_ref[...], 0.0)

    # ---- fused heads: one matmul produces [mean | log_std] ----
    heads = mm(h, wh_ref) + bh_ref[...]
    mean = heads[:, :A]
    log_std = jnp.clip(heads[:, A:], LOG_SIG_MIN, LOG_SIG_MAX)
    std = jnp.exp(log_std)

    # ---- reparameterized sample (deterministic path == zero noise) ----
    noise = noise_ref[...]
    pre_tanh = mean + std * noise
    action = jnp.tanh(pre_tanh)

    # ---- Normal(mean, std).log_prob(pre_tanh) with tanh correction ----
    # (pre_tanh - mean)/std == noise exactly, so the divide is skipped.
    log_prob = (-0.5 * noise * noise
                - log_std
                - 0.5 * jnp.log(2.0 * jnp.pi)
                - jnp.log(1.0 - action * action + ACTION_BOUND_EPSILON))
    log_prob = jnp.sum(log_prob, axis=1, keepdims=True)

    # ---- single lane-dense output slab: [mean | log_std | pre_tanh | lp] ----
    # std and the scaled action are recomputed in the wrapper (fused XLA
    # elementwise) instead of burning writeback bandwidth on them here.
    pieces = [mean, log_std, pre_tanh, log_prob]
    pad = out_width - (3 * A + 1)
    if pad > 0:
        pieces.append(jnp.zeros((mean.shape[0], pad), jnp.float32))
    out_ref[...] = jnp.concatenate(pieces, axis=1)


def tanh_gaussian_policy_forward(obs, params, noise, action_limit=1.0,
                                 matmul_dtype=None):
    """Full forward pass in one Pallas call, batch-tiled over a 1-D grid.

    Returns (action, mean, log_std, log_prob, std, pre_tanh_value), matching
    the PyTorch module's non-deterministic, return_log_prob=True path.
    """
    B, obs_dim = obs.shape
    h1 = params["w1"].shape[1]
    h2 = params["w2"].shape[1]
    A = params["wh"].shape[1] // 2

    if matmul_dtype is None:
        # bf16 MXU operands only pay off once the layer widths are real.
        matmul_dtype = jnp.bfloat16 if max(obs_dim, h1, h2) >= 256 else jnp.float32

    # Sublane-align the batch.  RL batches are normally multiples of 8, so the
    # full-array pad only triggers in the ragged corner case.
    B8 = _round_up(max(B, 1), 8)
    if B8 != B:
        obs = jnp.pad(obs, ((0, B8 - B), (0, 0)))
        noise = jnp.pad(noise, ((0, B8 - B), (0, 0)))

    TB = _choose_batch_tile(B8)        # divides B8 exactly -> no extra padding
    grid = (B8 // TB,)

    out_w = _round_up(3 * A + 1, 128)  # lane-dense output slab width

    # Weights go to the MXU dtype (halves weight DMA bytes in bf16 mode);
    # biases stay f32 for the elementwise tail.
    w1 = params["w1"].astype(matmul_dtype)
    w2 = params["w2"].astype(matmul_dtype)
    wh = params["wh"].astype(matmul_dtype)
    b1, b2, bh = params["b1"], params["b2"], params["bh"]

    def row_spec(d):
        return pl.BlockSpec((TB, d), lambda i: (i, 0))

    def resident_spec(shape):
        # Constant block index -> single resident VMEM copy (no double buffer).
        return pl.BlockSpec(shape, lambda i: (0, 0), pipeline_mode=pl.Buffered(1))

    # VMEM budget estimate: resident weights (single-buffered) + double-buffered
    # per-tile obs/noise/slab, with headroom.  Floored at the default 32 MiB,
    # capped at v7x's 64 MiB physical VMEM.
    w_itemsize = jnp.dtype(matmul_dtype).itemsize
    weight_bytes = (w1.size + w2.size + wh.size) * w_itemsize \
        + (b1.size + b2.size + bh.size) * 4
    tile_bytes = 2 * TB * (obs_dim + A + out_w) * 4
    vmem_limit = int(min(max(weight_bytes + tile_bytes + (4 << 20), 32 << 20),
                         64 << 20))

    slab = pl.pallas_call(
        functools.partial(_policy_kernel, A, out_w),
        out_shape=jax.ShapeDtypeStruct((B8, out_w), jnp.float32),
        grid=grid,
        in_specs=[
            row_spec(obs_dim),                       # obs (per-tile)
            resident_spec(w1.shape), resident_spec(b1.shape),
            resident_spec(w2.shape), resident_spec(b2.shape),
            resident_spec(wh.shape), resident_spec(bh.shape),
            row_spec(A),                             # noise (per-tile)
        ],
        out_specs=pl.BlockSpec((TB, out_w), lambda i: (i, 0)),
        compiler_params=pltpu.CompilerParams(
            dimension_semantics=("parallel",),
            vmem_limit_bytes=vmem_limit),
    )(obs, w1, b1, w2, b2, wh, bh, noise)

    mean = slab[:B, 0 * A:1 * A]
    log_std = slab[:B, 1 * A:2 * A]
    pre_tanh = slab[:B, 2 * A:3 * A]
    log_prob = slab[:B, 3 * A:3 * A + 1]
    # Redundant outputs recomputed here as cheap fused XLA elementwise ops
    # instead of extra slab columns (saves kernel writeback bandwidth).
    std = jnp.exp(log_std)
    action = jnp.tanh(pre_tanh) * action_limit
    return action, mean, log_std, log_prob, std, pre_tanh


def xavier_uniform(key, fan_in, fan_out):
    bound = jnp.sqrt(6.0 / (fan_in + fan_out))
    return jax.random.uniform(key, (fan_in, fan_out), jnp.float32, -bound, bound)


def init_params(key, obs_dim, action_dim, hidden_sizes):
    h1, h2 = hidden_sizes
    k1, k2, k3, k4 = jax.random.split(key, 4)
    # mean and log_std heads are initialized independently (matching the
    # PyTorch module) and then fused into one [h2, 2*action_dim] weight.
    wm = xavier_uniform(k3, h2, action_dim)
    ws = xavier_uniform(k4, h2, action_dim)
    # biases stored as (1, dim) so they broadcast over the batch in-kernel
    return {
        "w1": xavier_uniform(k1, obs_dim, h1),
        "b1": jnp.zeros((1, h1), jnp.float32),
        "w2": xavier_uniform(k2, h1, h2),
        "b2": jnp.zeros((1, h2), jnp.float32),
        "wh": jnp.concatenate([wm, ws], axis=1),
        "bh": jnp.zeros((1, 2 * action_dim), jnp.float32),
    }


if __name__ == "__main__":
    obs_dim, action_dim = 16, 8
    hidden_sizes = (32, 32)
    batch = 8

    key = jax.random.PRNGKey(0)
    k_params, k_obs, k_noise = jax.random.split(key, 3)

    params = init_params(k_params, obs_dim, action_dim, hidden_sizes)
    obs = jax.random.normal(k_obs, (batch, obs_dim), jnp.float32)
    noise = jax.random.normal(k_noise, (batch, action_dim), jnp.float32)

    action, mean, log_std, log_prob, std, pre_tanh = jax.block_until_ready(
        tanh_gaussian_policy_forward(obs, params, noise, action_limit=1.0))

    # Pure-JAX reference check of the same math.
    A = action_dim
    wm, ws = params["wh"][:, :A], params["wh"][:, A:]
    bm, bs = params["bh"][:, :A], params["bh"][:, A:]
    h = jnp.maximum(obs @ params["w1"] + params["b1"], 0.0)
    h = jnp.maximum(h @ params["w2"] + params["b2"], 0.0)
    mean_ref = h @ wm + bm
    log_std_ref = jnp.clip(h @ ws + bs, LOG_SIG_MIN, LOG_SIG_MAX)
    std_ref = jnp.exp(log_std_ref)
    pre_ref = mean_ref + std_ref * noise
    act_ref = jnp.tanh(pre_ref)
    lp_ref = (-0.5 * noise ** 2
              - log_std_ref - 0.5 * jnp.log(2.0 * jnp.pi)
              - jnp.log(1.0 - act_ref ** 2 + ACTION_BOUND_EPSILON)).sum(1, keepdims=True)

    assert jnp.allclose(action, act_ref, atol=1e-5)
    assert jnp.allclose(mean, mean_ref, atol=1e-5)
    assert jnp.allclose(log_std, log_std_ref, atol=1e-5)
    assert jnp.allclose(log_prob, lp_ref, atol=1e-4)
    assert jnp.allclose(std, std_ref, atol=1e-5)
    assert jnp.allclose(pre_tanh, pre_ref, atol=1e-5)

    print("KERNEL_OK")
</pallas_src>

<mosaic_0001>
module attributes {stable_mosaic.version = 11 : i64} {
  func.func @_policy_kernel(%arg0: i32, %arg1: memref<8x16xf32, #tpu.memory_space<vmem>>, %arg2: memref<16x32xf32, #tpu.memory_space<vmem>>, %arg3: memref<1x32xf32, #tpu.memory_space<vmem>>, %arg4: memref<32x32xf32, #tpu.memory_space<vmem>>, %arg5: memref<1x32xf32, #tpu.memory_space<vmem>>, %arg6: memref<32x16xf32, #tpu.memory_space<vmem>>, %arg7: memref<1x16xf32, #tpu.memory_space<vmem>>, %arg8: memref<8x8xf32, #tpu.memory_space<vmem>>, %arg9: memref<8x128xf32, #tpu.memory_space<vmem>>) attributes {dimension_semantics = [#tpu.dimension_semantics<parallel>], iteration_bounds = array<i64: 1>, scalar_prefetch = 0 : i64, scratch_operands = 0 : i64, tpu.core_type = #tpu.core_type<tc>, window_params = [{transform_indices = @transform_0, window_bounds = array<i64: 8, 16>}, {pipeline_mode = #tpu.pipeline_mode<synchronous>, transform_indices = @transform_1, window_bounds = array<i64: 16, 32>}, {pipeline_mode = #tpu.pipeline_mode<synchronous>, transform_indices = @transform_2, window_bounds = array<i64: 1, 32>}, {pipeline_mode = #tpu.pipeline_mode<synchronous>, transform_indices = @transform_3, window_bounds = array<i64: 32, 32>}, {pipeline_mode = #tpu.pipeline_mode<synchronous>, transform_indices = @transform_4, window_bounds = array<i64: 1, 32>}, {pipeline_mode = #tpu.pipeline_mode<synchronous>, transform_indices = @transform_5, window_bounds = array<i64: 32, 16>}, {pipeline_mode = #tpu.pipeline_mode<synchronous>, transform_indices = @transform_6, window_bounds = array<i64: 1, 16>}, {transform_indices = @transform_7, window_bounds = array<i64: 8, 8>}, {transform_indices = @transform_8, window_bounds = array<i64: 8, 128>}]} {
    %c0 = arith.constant 0 : index
    %c0_0 = arith.constant 0 : index
    %0 = vector.load %arg1[%c0, %c0_0] : memref<8x16xf32, #tpu.memory_space<vmem>>, vector<8x16xf32>
    %c0_1 = arith.constant 0 : index
    %c0_2 = arith.constant 0 : index
    %1 = vector.load %arg2[%c0_1, %c0_2] : memref<16x32xf32, #tpu.memory_space<vmem>>, vector<16x32xf32>
    %cst = arith.constant dense<0.000000e+00> : vector<8x32xf32>
    %2 = tpu.matmul %0, %1, %cst {dimension_numbers = #tpu.dot_dimension_numbers<[1], [0], [0], [1], [0, 0, 1, 1], [], []>} : vector<8x16xf32>, vector<16x32xf32>, vector<8x32xf32> -> vector<8x32xf32>
    %c0_3 = arith.constant 0 : index
    %c0_4 = arith.constant 0 : index
    %3 = vector.load %arg3[%c0_3, %c0_4] : memref<1x32xf32, #tpu.memory_space<vmem>>, vector<1x32xf32>
    %4 = vector.broadcast %3 : vector<1x32xf32> to vector<8x32xf32>
    %5 = arith.addf %2, %4 : vector<8x32xf32>
    %cst_5 = arith.constant 0.000000e+00 : f32
    %6 = vector.broadcast %cst_5 : f32 to vector<8x32xf32>
    %7 = arith.maximumf %5, %6 : vector<8x32xf32>
    %c0_6 = arith.constant 0 : index
    %c0_7 = arith.constant 0 : index
    %8 = vector.load %arg4[%c0_6, %c0_7] : memref<32x32xf32, #tpu.memory_space<vmem>>, vector<32x32xf32>
    %cst_8 = arith.constant dense<0.000000e+00> : vector<8x32xf32>
    %9 = tpu.matmul %7, %8, %cst_8 {dimension_numbers = #tpu.dot_dimension_numbers<[1], [0], [0], [1], [0, 0, 1, 1], [], []>} : vector<8x32xf32>, vector<32x32xf32>, vector<8x32xf32> -> vector<8x32xf32>
    %c0_9 = arith.constant 0 : index
    %c0_10 = arith.constant 0 : index
    %10 = vector.load %arg5[%c0_9, %c0_10] : memref<1x32xf32, #tpu.memory_space<vmem>>, vector<1x32xf32>
    %11 = vector.broadcast %10 : vector<1x32xf32> to vector<8x32xf32>
    %12 = arith.addf %9, %11 : vector<8x32xf32>
    %cst_11 = arith.constant 0.000000e+00 : f32
    %13 = vector.broadcast %cst_11 : f32 to vector<8x32xf32>
    %14 = arith.maximumf %12, %13 : vector<8x32xf32>
    %c0_12 = arith.constant 0 : index
    %c0_13 = arith.constant 0 : index
    %15 = vector.load %arg6[%c0_12, %c0_13] : memref<32x16xf32, #tpu.memory_space<vmem>>, vector<32x16xf32>
    %cst_14 = arith.constant dense<0.000000e+00> : vector<8x16xf32>
    %16 = tpu.matmul %14, %15, %cst_14 {dimension_numbers = #tpu.dot_dimension_numbers<[1], [0], [0], [1], [0, 0, 1, 1], [], []>} : vector<8x32xf32>, vector<32x16xf32>, vector<8x16xf32> -> vector<8x16xf32>
    %c0_15 = arith.constant 0 : index
    %c0_16 = arith.constant 0 : index
    %17 = vector.load %arg7[%c0_15, %c0_16] : memref<1x16xf32, #tpu.memory_space<vmem>>, vector<1x16xf32>
    %18 = vector.broadcast %17 : vector<1x16xf32> to vector<8x16xf32>
    %19 = arith.addf %16, %18 : vector<8x16xf32>
    %20 = vector.extract_strided_slice %19 {offsets = [0, 0], sizes = [8, 8], strides = [1, 1]} : vector<8x16xf32> to vector<8x8xf32>
    %21 = vector.extract_strided_slice %19 {offsets = [0, 8], sizes = [8, 8], strides = [1, 1]} : vector<8x16xf32> to vector<8x8xf32>
    %cst_17 = arith.constant -2.000000e+01 : f32
    %cst_18 = arith.constant 2.000000e+00 : f32
    %22 = vector.broadcast %cst_17 : f32 to vector<8x8xf32>
    %23 = arith.maximumf %22, %21 : vector<8x8xf32>
    %24 = vector.broadcast %cst_18 : f32 to vector<8x8xf32>
    %25 = arith.minimumf %24, %23 : vector<8x8xf32>
    %26 = math.exp %25 : vector<8x8xf32>
    %c0_19 = arith.constant 0 : index
    %c0_20 = arith.constant 0 : index
    %27 = vector.load %arg8[%c0_19, %c0_20] : memref<8x8xf32, #tpu.memory_space<vmem>>, vector<8x8xf32>
    %28 = arith.mulf %26, %27 : vector<8x8xf32>
    %29 = arith.addf %20, %28 : vector<8x8xf32>
    %30 = math.tanh %29 : vector<8x8xf32>
    %cst_21 = arith.constant -5.000000e-01 : f32
    %31 = vector.broadcast %cst_21 : f32 to vector<8x8xf32>
    %32 = arith.mulf %31, %27 : vector<8x8xf32>
    %33 = arith.mulf %32, %27 : vector<8x8xf32>
    %34 = arith.subf %33, %25 : vector<8x8xf32>
    %cst_22 = arith.constant 6.28318548 : f32
    %35 = math.log %cst_22 : f32
    %cst_23 = arith.constant 5.000000e-01 : f32
    %36 = arith.mulf %cst_23, %35 : f32
    %37 = vector.broadcast %36 : f32 to vector<8x8xf32>
    %38 = arith.subf %34, %37 : vector<8x8xf32>
    %39 = arith.mulf %30, %30 : vector<8x8xf32>
    %cst_24 = arith.constant 1.000000e+00 : f32
    %40 = vector.broadcast %cst_24 : f32 to vector<8x8xf32>
    %41 = arith.subf %40, %39 : vector<8x8xf32>
    %cst_25 = arith.constant 9.99999997E-7 : f32
    %42 = vector.broadcast %cst_25 : f32 to vector<8x8xf32>
    %43 = arith.addf %41, %42 : vector<8x8xf32>
    %44 = math.log %43 : vector<8x8xf32>
    %45 = arith.subf %38, %44 : vector<8x8xf32>
    %cst_26 = arith.constant dense<0.000000e+00> : vector<8xf32>
    %46 = vector.multi_reduction <add>, %45, %cst_26 [1] : vector<8x8xf32> to vector<8xf32>
    %47 = vector.shape_cast %46 : vector<8xf32> to vector<8x1xf32>
    %cst_27 = arith.constant 0.000000e+00 : f32
    %48 = vector.broadcast %cst_27 : f32 to vector<8x103xf32>
    %49 = tpu.concatenate %20, %25, %29, %47, %48 in 1 : vector<8x8xf32>, vector<8x8xf32>, vector<8x8xf32>, vector<8x1xf32>, vector<8x103xf32> -> vector<8x128xf32>
    %c0_28 = arith.constant 0 : index
    %c0_29 = arith.constant 0 : index
    %50 = vector.load %arg9[%c0_28, %c0_29] : memref<8x128xf32, #tpu.memory_space<vmem>>, vector<8x128xf32>
    tpu.vector_store %arg9[%c0_28, %c0_29], %49 {strides = array<i32>} : memref<8x128xf32, #tpu.memory_space<vmem>>, vector<8x128xf32>,
    return
  }
  func.func @transform_0(%arg0: i32) -> (i32, i32) {
    %c0_i32 = arith.constant 0 : i32
    %c0_i32_0 = arith.constant 0 : i32
    return %arg0, %c0_i32 : i32, i32
  }
  func.func @transform_1(%arg0: i32) -> (i32, i32) {
    %c0_i32 = arith.constant 0 : i32
    %c0_i32_0 = arith.constant 0 : i32
    %c0_i32_1 = arith.constant 0 : i32
    return %c0_i32, %c0_i32_0 : i32, i32
  }
  func.func @transform_2(%arg0: i32) -> (i32, i32) {
    %c0_i32 = arith.constant 0 : i32
    %c0_i32_0 = arith.constant 0 : i32
    %c0_i32_1 = arith.constant 0 : i32
    return %c0_i32, %c0_i32_0 : i32, i32
  }
  func.func @transform_3(%arg0: i32) -> (i32, i32) {
    %c0_i32 = arith.constant 0 : i32
    %c0_i32_0 = arith.constant 0 : i32
    %c0_i32_1 = arith.constant 0 : i32
    return %c0_i32, %c0_i32_0 : i32, i32
  }
  func.func @transform_4(%arg0: i32) -> (i32, i32) {
    %c0_i32 = arith.constant 0 : i32
    %c0_i32_0 = arith.constant 0 : i32
    %c0_i32_1 = arith.constant 0 : i32
    return %c0_i32, %c0_i32_0 : i32, i32
  }
  func.func @transform_5(%arg0: i32) -> (i32, i32) {
    %c0_i32 = arith.constant 0 : i32
    %c0_i32_0 = arith.constant 0 : i32
    %c0_i32_1 = arith.constant 0 : i32
    return %c0_i32, %c0_i32_0 : i32, i32
  }
  func.func @transform_6(%arg0: i32) -> (i32, i32) {
    %c0_i32 = arith.constant 0 : i32
    %c0_i32_0 = arith.constant 0 : i32
    %c0_i32_1 = arith.constant 0 : i32
    return %c0_i32, %c0_i32_0 : i32, i32
  }
  func.func @transform_7(%arg0: i32) -> (i32, i32) {
    %c0_i32 = arith.constant 0 : i32
    %c0_i32_0 = arith.constant 0 : i32
    return %arg0, %c0_i32 : i32, i32
  }
  func.func @transform_8(%arg0: i32) -> (i32, i32) {
    %c0_i32 = arith.constant 0 : i32
    %c0_i32_0 = arith.constant 0 : i32
    return %arg0, %c0_i32 : i32, i32
  }
}

</mosaic_0001>

<llo_original>
// kernel: tpu_custom_call.1
$region0: #{tpu_custom_call.1}
  #allocation0 [shape = 'u32[]', space=smem, size = 0x4, offset = 0x4, fixed_abs, tag = 'smem constant byte address 0x4 - core index']
  #allocation1 [shape = 'u32[72,128]{1,0:T(1,128)}', space=vmem, size = 0x9000, scoped, tag = 'internal scratch']
  %s0 = inlined_call_operand.hbm [shape: f32[8,16], index: 0, kind: input, shape index: {}]
  %s1 = inlined_call_operand.vmem [shape: f32[16,32], index: 1, kind: input, shape index: {}]
  %s2 = inlined_call_operand.vmem [shape: f32[1,32], index: 2, kind: input, shape index: {}]
  %s3 = inlined_call_operand.vmem [shape: f32[32,32], index: 3, kind: input, shape index: {}]
  %s4 = inlined_call_operand.vmem [shape: f32[1,32], index: 4, kind: input, shape index: {}]
  %s5 = inlined_call_operand.vmem [shape: f32[32,16], index: 5, kind: input, shape index: {}]
  %s6 = inlined_call_operand.vmem [shape: f32[1,16], index: 6, kind: input, shape index: {}]
  %s7 = inlined_call_operand.hbm [shape: f32[8,8], index: 7, kind: input, shape index: {}]
  %s8 = inlined_call_operand.hbm [shape: f32[8,128], index: 8, kind: output, shape index: {}]
  %s9 = sld [smem:[#allocation0]]
  $region50: #{tpu_custom_call.1} parent=0
    _
  %s11 = ssub.s32 1, %s9
  %s12 = scalar_select 0, %s11, %s9
  $region1: #{tpu_custom_call.1} parent=0
    #allocation2 [shape = 'u8[4096]{0}', space=vmem, size = 0x1000, scoped, tag = 'input window, operand 0, single buffered']
    #allocation3 [shape = 's32[1]{0}', space=sflag, size = 0x4, scoped, tag = 'scoped memory for tpu_custom_call.1']
    #allocation4 [shape = 's32[1]{0}', space=sflag, size = 0x4, scoped, tag = 'scoped memory for tpu_custom_call.1']
    #allocation5 [shape = 'u8[4096]{0}', space=vmem, size = 0x1000, scoped, tag = 'input window, operand 7, single buffered']
    #allocation6 [shape = 's32[1]{0}', space=sflag, size = 0x4, scoped, tag = 'scoped memory for tpu_custom_call.1']
    #allocation7 [shape = 'u8[4096]{0}', space=vmem, size = 0x1000, scoped, tag = 'output window, operand 0, single buffered']
    %13 = vsyncpa [#allocation3], 0
    %14 = vsyncpa [#allocation6], 0
    %15 = vsyncpa [#allocation4], 0
    // Predicated region
    $region2: #{tpu_custom_call.1} parent=1 // pred_check
      _
    $region3: #{tpu_custom_call.1} parent=1 // pred_check_branch
      %17 = sbr.rel (0) target = $region5
    $region4: #{tpu_custom_call.1} parent=1 // pred_region
      %19 = vsyncadd [#allocation3], 0
      %s21 = sshll.u32 %s0, 4
      %s22 = int_to_ptr.hbm [resolvable:$true] %s21
      %s23 = sshll.u32 [#allocation2], 4
      %s24 = int_to_ptr.vmem [resolvable:$true] %s23
      %26 = dma.hbm_to_vmem [thread:$0]  %s22, 128, %s24, [#allocation3]
    $region5: #{tpu_custom_call.1} parent=1 // pred_fallthru
      _
    // Predicated region
    $region6: #{tpu_custom_call.1} parent=1 // pred_check
      _
    $region7: #{tpu_custom_call.1} parent=1 // pred_check_branch
      %28 = sbr.rel (0) target = $region9
    $region8: #{tpu_custom_call.1} parent=1 // pred_region
      _
    $region9: #{tpu_custom_call.1} parent=1 // pred_fallthru
      _
    // Predicated region
    $region10: #{tpu_custom_call.1} parent=1 // pred_check
      _
    $region11: #{tpu_custom_call.1} parent=1 // pred_check_branch
      %30 = sbr.rel (0) target = $region13
    $region12: #{tpu_custom_call.1} parent=1 // pred_region
      _
    $region13: #{tpu_custom_call.1} parent=1 // pred_fallthru
      _
    // Predicated region
    $region14: #{tpu_custom_call.1} parent=1 // pred_check
      _
    $region15: #{tpu_custom_call.1} parent=1 // pred_check_branch
      %32 = sbr.rel (0) target = $region17
    $region16: #{tpu_custom_call.1} parent=1 // pred_region
      _
    $region17: #{tpu_custom_call.1} parent=1 // pred_fallthru
      _
    // Predicated region
    $region18: #{tpu_custom_call.1} parent=1 // pred_check
      _
    $region19: #{tpu_custom_call.1} parent=1 // pred_check_branch
      %34 = sbr.rel (0) target = $region21
    $region20: #{tpu_custom_call.1} parent=1 // pred_region
      _
    $region21: #{tpu_custom_call.1} parent=1 // pred_fallthru
      _
    // Predicated region
    $region22: #{tpu_custom_call.1} parent=1 // pred_check
      _
    $region23: #{tpu_custom_call.1} parent=1 // pred_check_branch
      %36 = sbr.rel (0) target = $region25
    $region24: #{tpu_custom_call.1} parent=1 // pred_region
      _
    $region25: #{tpu_custom_call.1} parent=1 // pred_fallthru
      _
    // Predicated region
    $region26: #{tpu_custom_call.1} parent=1 // pred_check
      _
    $region27: #{tpu_custom_call.1} parent=1 // pred_check_branch
      %38 = sbr.rel (0) target = $region29
    $region28: #{tpu_custom_call.1} parent=1 // pred_region
      _
    $region29: #{tpu_custom_call.1} parent=1 // pred_fallthru
      _
    // Predicated region
    $region30: #{tpu_custom_call.1} parent=1 // pred_check
      _
    $region31: #{tpu_custom_call.1} parent=1 // pred_check_branch
      %40 = sbr.rel (0) target = $region33
    $region32: #{tpu_custom_call.1} parent=1 // pred_region
      %42 = vsyncadd [#allocation6], 0
      %s44 = sshll.u32 %s7, 4
      %s45 = int_to_ptr.hbm [resolvable:$true] %s44
      %s46 = sshll.u32 [#allocation5], 4
      %s47 = int_to_ptr.vmem [resolvable:$true] %s46
      %49 = dma.hbm_to_vmem [thread:$0]  %s45, 128, %s47, [#allocation6]
    $region33: #{tpu_custom_call.1} parent=1 // pred_fallthru
      _
    // Predicated region
    $region34: #{tpu_custom_call.1} parent=1 // pred_check
      _
    $region35: #{tpu_custom_call.1} parent=1 // pred_check_branch
      %51 = sbr.rel (0) target = $region37
    $region36: #{tpu_custom_call.1} parent=1 // pred_region
      %53 = dma.done [#allocation3], 128
    $region37: #{tpu_custom_call.1} parent=1 // pred_fallthru
      _
    // Predicated region
    $region38: #{tpu_custom_call.1} parent=1 // pred_check
      _
    $region39: #{tpu_custom_call.1} parent=1 // pred_check_branch
      %55 = sbr.rel (0) target = $region41
    $region40: #{tpu_custom_call.1} parent=1 // pred_region
      %57 = dma.done [#allocation6], 128
    $region41: #{tpu_custom_call.1} parent=1 // pred_fallthru
      _
    %v58 = vld [vmem:[#allocation2] sm:$0xff]
    %v59 = vld [vmem:[%s1] sm:$0xff]
    %v60 = vld [vmem:[%s1 + $0x8] sm:$0xff]
    %v61 = vld [vmem:[%s2] sm:$0x1]
    %v63 = vperm.slane %v61, 0
    %vm65 = vcmask 130048
    %v67 = vsel %vm65, %v58, 0
    %69 = vmatpush.msra.mxu0 0.0
    %70 = vmatpush.msra.mxu0 0.0
    %71 = vmatpush.msra.mxu0 0.0
    %72 = vmatpush.msra.mxu0 0.0
    %73 = vmatpush.msra.mxu0 0.0
    %74 = vmatpush.msra.mxu0 0.0
    %75 = vmatpush.msra.mxu0 0.0
    %76 = vmatpush.msra.mxu0 0.0
    %77 = vmatpush.msra.mxu0 0.0
    %78 = vmatpush.msra.mxu0 0.0
    %79 = vmatpush.msra.mxu0 0.0
    %80 = vmatpush.msra.mxu0 0.0
    %81 = vmatpush.msra.mxu0 0.0
    %82 = vmatpush.msra.mxu0 0.0
    %83 = vmatpush.msra.mxu0 %v60
    %84 = vmatpush.msra.mxu0 %v59
    %85 = vmatmul.f32.gmra.mxu0 %v67
    %v86 = vpop.f32.mrf.mxu0
    %v87 = vadd.f32 %v63, %v86
    %88 = vdwg.mxu0
    %v89 = vmax.f32 %v87, 0.0
    %v90 = vld [vmem:[%s3] sm:$0xff]
    %v91 = vld [vmem:[%s3 + $0x8] sm:$0xff]
    %v92 = vld [vmem:[%s3 + $0x10] sm:$0xff]
    %v93 = vld [vmem:[%s3 + $0x18] sm:$0xff]
    %v94 = vld [vmem:[%s4] sm:$0x1]
    %v96 = vperm.slane %v94, 0
    %vm98 = vcmask 261120
    %v100 = vsel %vm98, %v89, 0
    %102 = vmatpush.msra.mxu0 0.0
    %103 = vmatpush.msra.mxu0 0.0
    %104 = vmatpush.msra.mxu0 0.0
    %105 = vmatpush.msra.mxu0 0.0
    %106 = vmatpush.msra.mxu0 0.0
    %107 = vmatpush.msra.mxu0 0.0
    %108 = vmatpush.msra.mxu0 0.0
    %109 = vmatpush.msra.mxu0 0.0
    %110 = vmatpush.msra.mxu0 0.0
    %111 = vmatpush.msra.mxu0 0.0
    %112 = vmatpush.msra.mxu0 0.0
    %113 = vmatpush.msra.mxu0 0.0
    %114 = vmatpush.msra.mxu0 %v93
    %115 = vmatpush.msra.mxu0 %v92
    %116 = vmatpush.msra.mxu0 %v91
    %117 = vmatpush.msra.mxu0 %v90
    %118 = vmatmul.f32.gmra.mxu0 %v100
    %v119 = vpop.f32.mrf.mxu0
    %v120 = vadd.f32 %v96, %v119
    %121 = vdwg.mxu0
    %v122 = vmax.f32 %v120, 0.0
    %v123 = vld [vmem:[%s5] sm:$0xff]
    %v124 = vld [vmem:[%s5 + $0x8] sm:$0xff]
    %v125 = vld [vmem:[%s5 + $0x10] sm:$0xff]
    %v126 = vld [vmem:[%s5 + $0x18] sm:$0xff]
    %v127 = vld [vmem:[%s6] sm:$0x1]
    %v129 = vperm.slane %v127, 0
    %v132 = vsel %vm98, %v122, 0
    %134 = vmatpush.msra.mxu0 0.0
    %135 = vmatpush.msra.mxu0 0.0
    %136 = vmatpush.msra.mxu0 0.0
    %137 = vmatpush.msra.mxu0 0.0
    %138 = vmatpush.msra.mxu0 0.0
    %139 = vmatpush.msra.mxu0 0.0
    %140 = vmatpush.msra.mxu0 0.0
    %141 = vmatpush.msra.mxu0 0.0
    %142 = vmatpush.msra.mxu0 0.0
    %143 = vmatpush.msra.mxu0 0.0
    %144 = vmatpush.msra.mxu0 0.0
    %145 = vmatpush.msra.mxu0 0.0
    %146 = vmatpush.msra.mxu0 %v126
    %147 = vmatpush.msra.mxu0 %v125
    %148 = vmatpush.msra.mxu0 %v124
    %149 = vmatpush.msra.mxu0 %v123
    %150 = vmatmul.f32.gmra.mxu0 %v132
    %v151 = vpop.f32.mrf.mxu0
    %v152 = vadd.f32 %v129, %v151
    %153 = vdwg.mxu0
    %v154 = vmax.f32 %v152, -20.0
    %v155 = vmin.f32 %v154, 2.0
    %v156 = vmul.f32 %v155, 1.442695
    %v157 = vpow.pop %v156
    %v158 = vld [vmem:[#allocation5] sm:$0xff]
    %160 = vrot.lane.b32.xlu0 %v158, 8
    %v161 = vpop.permute.xlu0 %160
    %v163 = vmul.f32 %v157, %v161
    %165 = vrot.lane.b32.xlu0 %v163, 120
    %v166 = vpop.permute.xlu0 %165
    %v168 = vadd.f32 %v152, %v166
    %v169 = vtanh.pop %v168
    %v170 = vmul.f32 %v158, -0.5
    %v171 = vmul.f32 %v170, %v158
    %173 = vrot.lane.b32.xlu0 %v155, 120
    %v174 = vpop.permute.xlu0 %173
    %v176 = vsub.f32 %v171, %v174
    %v177 = vsub.f32 %v176, 0.9189385
    %v178 = vmul.f32 %v169, %v169
    %v179 = vsub.f32 1.0, %v178
    %v180 = vadd.f32 %v179, 1e-06
    %v181 = vlog2.pop %v180
    %v182 = vmul.f32 %v181, 0.6931472
    %v183 = vsub.f32 %v177, %v182
    %vm184 = vcmask 64512
    %v185 = vsel %vm184, %v183, 0.0
    %186 = vadd.xlane.f32.xlu0 %v185
    %v187 = vpop.xlane.xlu0 %186
    %189 = vrot.lane.b32.xlu0 %v168, 16
    %v190 = vpop.permute.xlu0 %189
    %v192 = vsel %vm184, %v152, %v155
    %v193 = vsel %vm65, %v192, %v190
    %vm194 = vcmask 195584
    %v195 = vsel %vm194, %v193, %v187
    %vm196 = vcmask 203776
    %v197 = vsel %vm196, %v195, 0.0
    %198 = vst [vmem:[#allocation7] sm:$0xff] %v197
    // Predicated region
    $region42: #{tpu_custom_call.1} parent=1 // pred_check
      _
    $region43: #{tpu_custom_call.1} parent=1 // pred_check_branch
      %200 = sbr.rel (0) target = $region45
    $region44: #{tpu_custom_call.1} parent=1 // pred_region
      %202 = vsyncadd [#allocation4], 0
      %s204 = sshll.u32 [#allocation7], 4
      %s205 = int_to_ptr.vmem [resolvable:$true] %s204
      %s206 = sshll.u32 %s8, 4
      %s207 = int_to_ptr.hbm [resolvable:$true] %s206
      %209 = dma.vmem_to_hbm [thread:$0]  %s205, 128, %s207, [#allocation4]
    $region45: #{tpu_custom_call.1} parent=1 // pred_fallthru
      _
    // Predicated region
    $region46: #{tpu_custom_call.1} parent=1 // pred_check
      _
    $region47: #{tpu_custom_call.1} parent=1 // pred_check_branch
      %211 = sbr.rel (0) target = $region49
    $region48: #{tpu_custom_call.1} parent=1 // pred_region
      %213 = dma.done [#allocation4], 128
    $region49: #{tpu_custom_call.1} parent=1 // pred_fallthru
      _
    %214 = vsyncpa [#allocation3], 1
    %215 = vsyncpa [#allocation6], 1
    %216 = vsyncpa [#allocation4], 1

</llo_original>
